<compile_context>
chip_gen: v6e
topology: v6e:2x2x1
jax: 0.10.0
libtpu: 0.0.40
codegen_flags: <defaults>
</compile_context>

<pallas_src>
import jax
import jax.numpy as jnp
from jax import lax
from jax.experimental import pallas as pl
from jax.experimental.pallas import tpu as pltpu


def _round_up(x, m):
    return ((x + m - 1) // m) * m


def _vmem_cap_bytes():
    try:
        return int(pltpu.get_tpu_info().vmem_capacity_bytes)
    except Exception:
        return 64 * 1024 * 1024  # conservative: v7x per-TensorCore VMEM


def _clamp_vmem(needed_bytes):
    ceiling = int(_vmem_cap_bytes() * 0.85)  # leave Mosaic-internal headroom
    return int(min(max(int(needed_bytes), 32 * 1024 * 1024), ceiling))


# ----------------------------------------------------------------------------------
# Path 1: one-hot MXU gather (small tables).
# ----------------------------------------------------------------------------------
def _mf_onehot_kernel(uidx_ref, aidx_ref, ut_ref, vt_ref, o_ref):
    # uidx_ref / aidx_ref : (1, b_tile) int32 VMEM blocks (this tile's indices).
    # ut_ref / vt_ref     : (rank, n_users) / (rank, n_animes) VMEM-resident tables
    #                       (transposed so the gather matmul result is lane-dense).
    # o_ref               : (1, b_tile) lane-dense output block.
    n_users = ut_ref.shape[1]
    n_animes = vt_ref.shape[1]
    b_tile = o_ref.shape[1]
    tab_dtype = ut_ref.dtype

    uidx = uidx_ref[...]                                   # (1, b_tile) int32
    aidx = aidx_ref[...]

    # One-hot masks, row index along sublanes: onehot[r, b] = (idx[b] == r).
    onehot_u = (lax.broadcasted_iota(jnp.int32, (n_users, b_tile), 0) == uidx
                ).astype(tab_dtype)
    onehot_v = (lax.broadcasted_iota(jnp.int32, (n_animes, b_tile), 0) == aidx
                ).astype(tab_dtype)

    # MXU gather: (rank, n_rows) @ (n_rows, b_tile) -> (rank, b_tile) == rows^T.
    u_gt = jnp.dot(ut_ref[...], onehot_u, preferred_element_type=jnp.float32)
    v_gt = jnp.dot(vt_ref[...], onehot_v, preferred_element_type=jnp.float32)

    # Rank reduction = sublane reduce; lands lane-dense, no relayout needed.
    o_ref[...] = jnp.sum(u_gt * v_gt, axis=0, keepdims=True).astype(o_ref.dtype)


def _forward_onehot(U, V, user_i, anime_i, B, b_tile, num_tiles):
    n_users, rank = U.shape
    n_animes, _ = V.shape
    itemsize = U.dtype.itemsize

    # Transposed tables (tiny on this path) so the gather matmul is in the MXU's
    # natural (M,K)x(K,N) orientation.
    ut = U.T
    vt = V.T

    uidx = user_i.reshape(num_tiles, b_tile)
    aidx = anime_i.reshape(num_tiles, b_tile)

    tbl_bytes = (U.size + V.size) * itemsize
    onehot_bytes = (n_users + n_animes) * b_tile * itemsize
    interm_bytes = onehot_bytes + 4 * rank * b_tile * 4
    vmem_needed = (2 * tbl_bytes          # resident tables (default double-buffered)
                   + 2 * 2 * b_tile * 4   # index blocks
                   + 2 * b_tile * 4       # output blocks
                   + interm_bytes
                   + (2 << 20))
    vmem_limit = _clamp_vmem(vmem_needed)

    cost = pl.CostEstimate(
        flops=2 * num_tiles * b_tile * (n_users + n_animes + 1) * rank,
        transcendentals=0,
        bytes_accessed=tbl_bytes + 3 * num_tiles * b_tile * 4,
    )

    out = pl.pallas_call(
        _mf_onehot_kernel,
        out_shape=jax.ShapeDtypeStruct((num_tiles, b_tile), jnp.float32),
        grid=(num_tiles,),
        in_specs=[
            pl.BlockSpec((1, b_tile), lambda t: (t, 0)),
            pl.BlockSpec((1, b_tile), lambda t: (t, 0)),
            # Full tables, VMEM-resident (constant block index -> fetched once).
            pl.BlockSpec((rank, n_users), lambda t: (0, 0)),
            pl.BlockSpec((rank, n_animes), lambda t: (0, 0)),
        ],
        out_specs=pl.BlockSpec((1, b_tile), lambda t: (t, 0)),
        compiler_params=pltpu.CompilerParams(
            dimension_semantics=("parallel",),
            vmem_limit_bytes=vmem_limit,
        ),
        cost_estimate=cost,
    )(uidx, aidx, ut, vt)

    return out.reshape(-1)[:B]


# ----------------------------------------------------------------------------------
# Path 2: vectorized VPU row-gather (larger tables, still VMEM-resident).
# ----------------------------------------------------------------------------------
def _mf_gather_kernel(user_ref, anime_ref, u_tab_ref, v_tab_ref, o_ref, prod_sc):
    # user_ref / anime_ref : SMEM scalar-prefetch refs (full padded index vectors).
    # u_tab_ref / v_tab_ref: VMEM-resident tables (n_rows, rank).
    # o_ref                : (b_tile, 1) output block (tiny masked stores).
    # prod_sc              : (b_tile, rank) f32 VMEM scratch.
    b_tile, _ = prod_sc.shape
    base = pl.program_id(0) * b_tile

    def group_body(g, carry):
        off = pl.multiple_of(g * 8, 8)
        # Gather 8 rows per table into one (8, rank) vreg slab (no staging stores).
        u_rows = [u_tab_ref[pl.ds(user_ref[base + off + j], 1), :] for j in range(8)]
        v_rows = [v_tab_ref[pl.ds(anime_ref[base + off + j], 1), :] for j in range(8)]
        u_slab = jnp.concatenate(u_rows, axis=0).astype(jnp.float32)
        v_slab = jnp.concatenate(v_rows, axis=0).astype(jnp.float32)
        # One full-height multiply + one aligned 8-row store per group.
        prod_sc[pl.ds(off, 8), :] = u_slab * v_slab
        return carry

    lax.fori_loop(0, b_tile // 8, group_body, 0, unroll=2)

    # Single vectorized rank reduction for the whole tile; (b_tile, 1) needs no relayout.
    o_ref[...] = jnp.sum(prod_sc[...], axis=-1, keepdims=True).astype(o_ref.dtype)


def _forward_gather(U, V, user_i, anime_i, B, b_tile, num_tiles):
    n_users, rank = U.shape
    n_animes, _ = V.shape
    itemsize = U.dtype.itemsize

    tbl_bytes = (U.size + V.size) * itemsize
    scratch_bytes = b_tile * rank * 4
    vmem_needed = 2 * tbl_bytes + scratch_bytes + 4 * b_tile * 4 + (2 << 20)
    if vmem_needed > int(_vmem_cap_bytes() * 0.85):
        # TODO(synk): HBM (memory_space=pl.ANY) + manual double-buffered DMA row gather
        # for tables too large to stay VMEM-resident.
        raise NotImplementedError(
            "Embedding tables too large for the VMEM-resident gather path.")
    vmem_limit = _clamp_vmem(vmem_needed)

    cost = pl.CostEstimate(
        flops=2 * num_tiles * b_tile * rank,
        transcendentals=0,
        bytes_accessed=tbl_bytes + 3 * num_tiles * b_tile * 4,
    )

    out = pl.pallas_call(
        _mf_gather_kernel,
        out_shape=jax.ShapeDtypeStruct((num_tiles * b_tile, 1), jnp.float32),
        grid_spec=pltpu.PrefetchScalarGridSpec(
            num_scalar_prefetch=2,          # user, anime index vectors -> SMEM
            grid=(num_tiles,),
            in_specs=[
                pl.BlockSpec((n_users, rank), lambda t, u, a: (0, 0)),
                pl.BlockSpec((n_animes, rank), lambda t, u, a: (0, 0)),
            ],
            out_specs=pl.BlockSpec((b_tile, 1), lambda t, u, a: (t, 0)),
            scratch_shapes=[pltpu.VMEM((b_tile, rank), jnp.float32)],
        ),
        compiler_params=pltpu.CompilerParams(
            dimension_semantics=("parallel",),
            vmem_limit_bytes=vmem_limit,
        ),
        cost_estimate=cost,
    )(user_i, anime_i, U, V)

    return out.reshape(-1)[:B]


# ----------------------------------------------------------------------------------
# Public wrapper.
# ----------------------------------------------------------------------------------
def matrix_factorization_forward(U, V, user, anime, *, b_tile=1024,
                                 onehot_max_rows=1024, table_dtype=None):
    """R_hat[b] = sum_r U[user[b], r] * V[anime[b], r]  ->  shape (B,) float32."""
    n_users, rank = U.shape
    n_animes, rank_v = V.shape
    assert rank == rank_v
    B = int(user.shape[0])

    if table_dtype is not None:          # e.g. jnp.bfloat16 to halve table residency
        U = U.astype(table_dtype)
        V = V.astype(table_dtype)

    # Batch tiling: b_tile elements per grid step (multiple of 128, lane-dense).
    b_tile = max(128, min(int(b_tile), _round_up(B, 128)))
    b_tile = _round_up(b_tile, 128)
    num_tiles = pl.cdiv(B, b_tile)
    b_pad = num_tiles * b_tile

    # Bounds-safe int32 indices, padded to the tile grid (pad rows read row 0 and are
    # sliced off).  Note: clip silently maps out-of-range ids to boundary rows.
    user_i = jnp.clip(user.astype(jnp.int32), 0, n_users - 1)
    anime_i = jnp.clip(anime.astype(jnp.int32), 0, n_animes - 1)
    if b_pad != B:
        user_i = jnp.pad(user_i, (0, b_pad - B))
        anime_i = jnp.pad(anime_i, (0, b_pad - B))

    if max(n_users, n_animes) <= onehot_max_rows:
        return _forward_onehot(U, V, user_i, anime_i, B, b_tile, num_tiles)
    return _forward_gather(U, V, user_i, anime_i, B, b_tile, num_tiles)


if __name__ == "__main__":
    # Small shapes consistent with the module.
    n_users, n_animes, rank = 64, 48, 32
    batch = 8

    key = jax.random.PRNGKey(0)
    k_u, k_v, k_user, k_anime, k_user2, k_anime2 = jax.random.split(key, 6)

    # Deterministic "reset_parameters": standard-normal U and V.
    U = jax.random.normal(k_u, (n_users, rank), dtype=jnp.float32)
    V = jax.random.normal(k_v, (n_animes, rank), dtype=jnp.float32)

    # Deterministic example index batch.
    user = jax.random.randint(k_user, (batch,), 0, n_users, dtype=jnp.int32)
    anime = jax.random.randint(k_anime, (batch,), 0, n_animes, dtype=jnp.int32)

    r_hat = jax.block_until_ready(matrix_factorization_forward(U, V, user, anime))
    r_ref = jnp.sum(U[user] * V[anime], axis=1)
    assert r_hat.shape == (batch,)
    assert jnp.allclose(r_hat, r_ref, atol=1e-5, rtol=1e-5), (r_hat, r_ref)

    # Multi-tile check (grid > 1, padded tail) on the same small tables.
    batch2 = 300
    user2 = jax.random.randint(k_user2, (batch2,), 0, n_users, dtype=jnp.int32)
    anime2 = jax.random.randint(k_anime2, (batch2,), 0, n_animes, dtype=jnp.int32)
    r_hat2 = jax.block_until_ready(
        matrix_factorization_forward(U, V, user2, anime2, b_tile=128))
    r_ref2 = jnp.sum(U[user2] * V[anime2], axis=1)
    assert r_hat2.shape == (batch2,)
    assert jnp.allclose(r_hat2, r_ref2, atol=1e-5, rtol=1e-5)

    print("KERNEL_OK")
</pallas_src>

<mosaic_0001>
module attributes {stable_mosaic.version = 11 : i64} {
  func.func @_mf_onehot_kernel(%arg0: i32, %arg1: memref<1x128xi32, #tpu.memory_space<vmem>>, %arg2: memref<1x128xi32, #tpu.memory_space<vmem>>, %arg3: memref<32x64xf32, #tpu.memory_space<vmem>>, %arg4: memref<32x48xf32, #tpu.memory_space<vmem>>, %arg5: memref<1x128xf32, #tpu.memory_space<vmem>>) attributes {dimension_semantics = [#tpu.dimension_semantics<parallel>], iteration_bounds = array<i64: 1>, scalar_prefetch = 0 : i64, scratch_operands = 0 : i64, tpu.core_type = #tpu.core_type<tc>, window_params = [{transform_indices = @transform_0, window_bounds = array<i64: 1, 128>}, {transform_indices = @transform_1, window_bounds = array<i64: 1, 128>}, {pipeline_mode = #tpu.pipeline_mode<synchronous>, transform_indices = @transform_2, window_bounds = array<i64: 32, 64>}, {pipeline_mode = #tpu.pipeline_mode<synchronous>, transform_indices = @transform_3, window_bounds = array<i64: 32, 48>}, {transform_indices = @transform_4, window_bounds = array<i64: 1, 128>}]} {
    %c0 = arith.constant 0 : index
    %c0_0 = arith.constant 0 : index
    %0 = vector.load %arg1[%c0, %c0_0] : memref<1x128xi32, #tpu.memory_space<vmem>>, vector<1x128xi32>
    %c0_1 = arith.constant 0 : index
    %c0_2 = arith.constant 0 : index
    %1 = vector.load %arg2[%c0_1, %c0_2] : memref<1x128xi32, #tpu.memory_space<vmem>>, vector<1x128xi32>
    %2 = tpu.iota {dimensions = array<i32: 0>} : vector<64x128xi32>
    %3 = vector.broadcast %0 : vector<1x128xi32> to vector<64x128xi32>
    %4 = arith.cmpi eq, %2, %3 : vector<64x128xi32>
    %5 = arith.extui %4 : vector<64x128xi1> to vector<64x128xi32>
    %6 = arith.sitofp %5 : vector<64x128xi32> to vector<64x128xf32>
    %7 = tpu.iota {dimensions = array<i32: 0>} : vector<48x128xi32>
    %8 = vector.broadcast %1 : vector<1x128xi32> to vector<48x128xi32>
    %9 = arith.cmpi eq, %7, %8 : vector<48x128xi32>
    %10 = arith.extui %9 : vector<48x128xi1> to vector<48x128xi32>
    %11 = arith.sitofp %10 : vector<48x128xi32> to vector<48x128xf32>
    %c0_3 = arith.constant 0 : index
    %c0_4 = arith.constant 0 : index
    %12 = vector.load %arg3[%c0_3, %c0_4] : memref<32x64xf32, #tpu.memory_space<vmem>>, vector<32x64xf32>
    %cst = arith.constant dense<0.000000e+00> : vector<32x128xf32>
    %13 = tpu.matmul %12, %6, %cst {dimension_numbers = #tpu.dot_dimension_numbers<[1], [0], [0], [1], [0, 0, 1, 1], [], []>} : vector<32x64xf32>, vector<64x128xf32>, vector<32x128xf32> -> vector<32x128xf32>
    %c0_5 = arith.constant 0 : index
    %c0_6 = arith.constant 0 : index
    %14 = vector.load %arg4[%c0_5, %c0_6] : memref<32x48xf32, #tpu.memory_space<vmem>>, vector<32x48xf32>
    %cst_7 = arith.constant dense<0.000000e+00> : vector<32x128xf32>
    %15 = tpu.matmul %14, %11, %cst_7 {dimension_numbers = #tpu.dot_dimension_numbers<[1], [0], [0], [1], [0, 0, 1, 1], [], []>} : vector<32x48xf32>, vector<48x128xf32>, vector<32x128xf32> -> vector<32x128xf32>
    %16 = arith.mulf %13, %15 : vector<32x128xf32>
    %cst_8 = arith.constant dense<0.000000e+00> : vector<128xf32>
    %17 = vector.multi_reduction <add>, %16, %cst_8 [0] : vector<32x128xf32> to vector<128xf32>
    %18 = vector.shape_cast %17 : vector<128xf32> to vector<1x128xf32>
    %c0_9 = arith.constant 0 : index
    %c0_10 = arith.constant 0 : index
    %19 = vector.load %arg5[%c0_9, %c0_10] : memref<1x128xf32, #tpu.memory_space<vmem>>, vector<1x128xf32>
    tpu.vector_store %arg5[%c0_9, %c0_10], %18 {strides = array<i32>} : memref<1x128xf32, #tpu.memory_space<vmem>>, vector<1x128xf32>,
    return
  }
  func.func @transform_0(%arg0: i32) -> (i32, i32) {
    %c0_i32 = arith.constant 0 : i32
    %c0_i32_0 = arith.constant 0 : i32
    return %arg0, %c0_i32 : i32, i32
  }
  func.func @transform_1(%arg0: i32) -> (i32, i32) {
    %c0_i32 = arith.constant 0 : i32
    %c0_i32_0 = arith.constant 0 : i32
    return %arg0, %c0_i32 : i32, i32
  }
  func.func @transform_2(%arg0: i32) -> (i32, i32) {
    %c0_i32 = arith.constant 0 : i32
    %c0_i32_0 = arith.constant 0 : i32
    %c0_i32_1 = arith.constant 0 : i32
    return %c0_i32, %c0_i32_0 : i32, i32
  }
  func.func @transform_3(%arg0: i32) -> (i32, i32) {
    %c0_i32 = arith.constant 0 : i32
    %c0_i32_0 = arith.constant 0 : i32
    %c0_i32_1 = arith.constant 0 : i32
    return %c0_i32, %c0_i32_0 : i32, i32
  }
  func.func @transform_4(%arg0: i32) -> (i32, i32) {
    %c0_i32 = arith.constant 0 : i32
    %c0_i32_0 = arith.constant 0 : i32
    return %arg0, %c0_i32 : i32, i32
  }
}

</mosaic_0001>

<llo_original>
// kernel: tpu_custom_call.1
$region0: #{tpu_custom_call.1}
  #allocation0 [shape = 'u32[]', space=smem, size = 0x4, offset = 0x4, fixed_abs, tag = 'smem constant byte address 0x4 - core index']
  #allocation1 [shape = 'u32[144,128]{1,0:T(1,128)}', space=vmem, size = 0x12000, scoped, tag = 'internal scratch']
  %s0 = inlined_call_operand.hbm [shape: s32[1,128], index: 0, kind: input, shape index: {}]
  %s1 = inlined_call_operand.vmem [shape: s32[1,128], index: 1, kind: input, shape index: {}]
  %s2 = inlined_call_operand.hbm [shape: f32[32,64], index: 2, kind: input, shape index: {}]
  %s3 = inlined_call_operand.hbm [shape: f32[32,48], index: 3, kind: input, shape index: {}]
  %s4 = inlined_call_operand.hbm [shape: f32[1,128], index: 4, kind: output, shape index: {}]
  %s5 = sld [smem:[#allocation0]]
  $region38: #{tpu_custom_call.1} parent=0
    _
  %s7 = ssub.s32 1, %s5
  %s8 = scalar_select 0, %s7, %s5
  $region1: #{tpu_custom_call.1} parent=0
    #allocation2 [shape = 'u8[512]{0}', space=vmem, size = 0x400, scoped, tag = 'input window, operand 0, single buffered']
    #allocation3 [shape = 's32[1]{0}', space=sflag, size = 0x4, scoped, tag = 'scoped memory for tpu_custom_call.1']
    #allocation4 [shape = 's32[1]{0}', space=sflag, size = 0x4, scoped, tag = 'scoped memory for tpu_custom_call.1']
    #allocation5 [shape = 'u8[16384]{0}', space=vmem, size = 0x4000, scoped, tag = 'input window, operand 2, single buffered']
    #allocation6 [shape = 's32[1]{0}', space=sflag, size = 0x4, scoped, tag = 'scoped memory for tpu_custom_call.1']
    #allocation7 [shape = 'u8[16384]{0}', space=vmem, size = 0x4000, scoped, tag = 'input window, operand 3, single buffered']
    #allocation8 [shape = 'u8[512]{0}', space=vmem, size = 0x400, scoped, tag = 'output window, operand 0, single buffered']
    %9 = vsyncpa [#allocation3], 0
    %10 = vsyncpa [#allocation6], 0
    %11 = vsyncpa [#allocation4], 0
    // Predicated region
    $region2: #{tpu_custom_call.1} parent=1 // pred_check
      _
    $region3: #{tpu_custom_call.1} parent=1 // pred_check_branch
      %13 = sbr.rel (0) target = $region5
    $region4: #{tpu_custom_call.1} parent=1 // pred_region
      %s15 = ssub.s32 16, 16
      %16 = vsyncadd [#allocation3], %s15
      %s18 = sshll.u32 [#allocation2], 4
      %s19 = int_to_ptr.vmem [resolvable:$true] %s18
      %21 = dma.hbm_to_vmem [thread:$0]  %s0, 16, %s19, [#allocation3]
    $region5: #{tpu_custom_call.1} parent=1 // pred_fallthru
      _
    // Predicated region
    $region6: #{tpu_custom_call.1} parent=1 // pred_check
      _
    $region7: #{tpu_custom_call.1} parent=1 // pred_check_branch
      %23 = sbr.rel (0) target = $region9
    $region8: #{tpu_custom_call.1} parent=1 // pred_region
      _
    $region9: #{tpu_custom_call.1} parent=1 // pred_fallthru
      _
    // Predicated region
    $region10: #{tpu_custom_call.1} parent=1 // pred_check
      _
    $region11: #{tpu_custom_call.1} parent=1 // pred_check_branch
      %25 = sbr.rel (0) target = $region13
    $region12: #{tpu_custom_call.1} parent=1 // pred_region
      %s27 = ssub.s32 512, 512
      %28 = vsyncadd [#allocation6], %s27
      %s29 = sshll.u32 [#allocation5], 4
      %s30 = int_to_ptr.vmem [resolvable:$true] %s29
      %35 = dma.hbm_to_vmem [thread:$0]  %s2, 512, %s30, [#allocation6], 128, 128, 8
    $region13: #{tpu_custom_call.1} parent=1 // pred_fallthru
      _
    // Predicated region
    $region14: #{tpu_custom_call.1} parent=1 // pred_check
      _
    $region15: #{tpu_custom_call.1} parent=1 // pred_check_branch
      %37 = sbr.rel (0) target = $region17
    $region16: #{tpu_custom_call.1} parent=1 // pred_region
      %s39 = ssub.s32 512, 512
      %40 = vsyncadd [#allocation6], %s39
      %s41 = sshll.u32 [#allocation7], 4
      %s42 = int_to_ptr.vmem [resolvable:$true] %s41
      %47 = dma.hbm_to_vmem [thread:$0]  %s3, 512, %s42, [#allocation6], 128, 128, 8
    $region17: #{tpu_custom_call.1} parent=1 // pred_fallthru
      _
    // Predicated region
    $region18: #{tpu_custom_call.1} parent=1 // pred_check
      _
    $region19: #{tpu_custom_call.1} parent=1 // pred_check_branch
      %49 = sbr.rel (0) target = $region21
    $region20: #{tpu_custom_call.1} parent=1 // pred_region
      %50 = dma.done [#allocation3], 16
    $region21: #{tpu_custom_call.1} parent=1 // pred_fallthru
      _
    // Predicated region
    $region22: #{tpu_custom_call.1} parent=1 // pred_check
      _
    $region23: #{tpu_custom_call.1} parent=1 // pred_check_branch
      %52 = sbr.rel (0) target = $region25
    $region24: #{tpu_custom_call.1} parent=1 // pred_region
      %53 = dma.done [#allocation6], 512
    $region25: #{tpu_custom_call.1} parent=1 // pred_fallthru
      _
    // Predicated region
    $region26: #{tpu_custom_call.1} parent=1 // pred_check
      _
    $region27: #{tpu_custom_call.1} parent=1 // pred_check_branch
      %55 = sbr.rel (0) target = $region29
    $region28: #{tpu_custom_call.1} parent=1 // pred_region
      %56 = dma.done [#allocation6], 512
    $region29: #{tpu_custom_call.1} parent=1 // pred_fallthru
      _
    %v57 = vld [vmem:[#allocation2] sm:$0x1]
    %v58 = vld [vmem:[%s1] sm:$0x1]
    %v59 = vlaneseq
    %v60 = vshrl.u32 %v59, 7
    %v61 = vadd.s32 %v60, 8
    %v62 = vadd.s32 %v60, 16
    %v63 = vadd.s32 %v60, 24
    %v64 = vadd.s32 %v60, 32
    %v65 = vadd.s32 %v60, 40
    %v66 = vadd.s32 %v60, 48
    %v67 = vadd.s32 %v60, 56
    %v68 = vlaneseq
    %v69 = vshrl.u32 %v68, 7
    %v70 = vsub.s32 0, %v69
    %v71 = vrot.slane %v57, %v70
    %vm72 = vcmp.eq.s32.totalorder %v60, %v71
    %vm73 = vcmp.eq.s32.totalorder %v61, %v71
    %vm74 = vcmp.eq.s32.totalorder %v62, %v71
    %vm75 = vcmp.eq.s32.totalorder %v63, %v71
    %vm76 = vcmp.eq.s32.totalorder %v64, %v71
    %vm77 = vcmp.eq.s32.totalorder %v65, %v71
    %vm78 = vcmp.eq.s32.totalorder %v66, %v71
    %vm79 = vcmp.eq.s32.totalorder %v67, %v71
    %v80 = vsel %vm72, 1, 0
    %v81 = vsel %vm73, 1, 0
    %v82 = vsel %vm74, 1, 0
    %v83 = vsel %vm75, 1, 0
    %v84 = vsel %vm76, 1, 0
    %v85 = vsel %vm77, 1, 0
    %v86 = vsel %vm78, 1, 0
    %v87 = vsel %vm79, 1, 0
    %v88 = vcvt.s32.f32 %v80
    %v89 = vcvt.s32.f32 %v81
    %v90 = vcvt.s32.f32 %v82
    %v91 = vcvt.s32.f32 %v83
    %v92 = vcvt.s32.f32 %v84
    %v93 = vcvt.s32.f32 %v85
    %v94 = vcvt.s32.f32 %v86
    %v95 = vcvt.s32.f32 %v87
    %v96 = vlaneseq
    %v97 = vshrl.u32 %v96, 7
    %v98 = vsub.s32 0, %v97
    %v99 = vrot.slane %v58, %v98
    %vm100 = vcmp.eq.s32.totalorder %v60, %v99
    %vm101 = vcmp.eq.s32.totalorder %v61, %v99
    %vm102 = vcmp.eq.s32.totalorder %v62, %v99
    %vm103 = vcmp.eq.s32.totalorder %v63, %v99
    %vm104 = vcmp.eq.s32.totalorder %v64, %v99
    %vm105 = vcmp.eq.s32.totalorder %v65, %v99
    %v106 = vsel %vm100, 1, 0
    %v107 = vsel %vm101, 1, 0
    %v108 = vsel %vm102, 1, 0
    %v109 = vsel %vm103, 1, 0
    %v110 = vsel %vm104, 1, 0
    %v111 = vsel %vm105, 1, 0
    %v112 = vcvt.s32.f32 %v106
    %v113 = vcvt.s32.f32 %v107
    %v114 = vcvt.s32.f32 %v108
    %v115 = vcvt.s32.f32 %v109
    %v116 = vcvt.s32.f32 %v110
    %v117 = vcvt.s32.f32 %v111
    %v118 = vld [vmem:[#allocation5] sm:$0xff]
    %v119 = vld [vmem:[#allocation5 + $0x8] sm:$0xff]
    %v120 = vld [vmem:[#allocation5 + $0x10] sm:$0xff]
    %v121 = vld [vmem:[#allocation5 + $0x18] sm:$0xff]
    %vm122 = vcmask 523264
    %v124 = vsel %vm122, %v118, 0
    %v127 = vsel %vm122, %v119, 0
    %v130 = vsel %vm122, %v120, 0
    %v133 = vsel %vm122, %v121, 0
    %135 = vmatprep.subr.mxu0 0.0
    %136 = vmatpush1.msra.mxu0 0.0
    %137 = vmatprep.subr.mxu0 0.0
    %138 = vmatpush1.msra.mxu0 0.0
    %139 = vmatprep.subr.mxu0 0.0
    %140 = vmatpush1.msra.mxu0 0.0
    %141 = vmatprep.subr.mxu0 0.0
    %142 = vmatpush1.msra.mxu0 0.0
    %143 = vmatprep.subr.mxu0 0.0
    %144 = vmatpush1.msra.mxu0 0.0
    %145 = vmatprep.subr.mxu0 0.0
    %146 = vmatpush1.msra.mxu0 0.0
    %147 = vmatprep.subr.mxu0 0.0
    %148 = vmatpush1.msra.mxu0 0.0
    %149 = vmatprep.subr.mxu0 0.0
    %150 = vmatpush1.msra.mxu0 0.0
    %151 = vmatprep.subr.mxu0 0.0
    %152 = vmatpush1.msra.mxu0 %v95
    %153 = vmatprep.subr.mxu0 0.0
    %154 = vmatpush1.msra.mxu0 %v94
    %155 = vmatprep.subr.mxu0 0.0
    %156 = vmatpush1.msra.mxu0 %v93
    %157 = vmatprep.subr.mxu0 0.0
    %158 = vmatpush1.msra.mxu0 %v92
    %159 = vmatprep.subr.mxu0 0.0
    %160 = vmatpush1.msra.mxu0 %v91
    %161 = vmatprep.subr.mxu0 0.0
    %162 = vmatpush1.msra.mxu0 %v90
    %163 = vmatprep.subr.mxu0 0.0
    %164 = vmatpush1.msra.mxu0 %v89
    %165 = vmatprep.subr.mxu0 0.0
    %166 = vmatpush1.msra.mxu0 %v88
    %167 = vmatprep.subr.mxu0 0.0
    %168 = vmatpush2.msra.mxu0 0.0
    %169 = vmatprep.subr.mxu0 0.0
    %170 = vmatpush2.msra.mxu0 0.0
    %171 = vmatprep.subr.mxu0 0.0
    %172 = vmatpush2.msra.mxu0 0.0
    %173 = vmatprep.subr.mxu0 0.0
    %174 = vmatpush2.msra.mxu0 0.0
    %175 = vmatprep.subr.mxu0 0.0
    %176 = vmatpush2.msra.mxu0 0.0
    %177 = vmatprep.subr.mxu0 0.0
    %178 = vmatpush2.msra.mxu0 0.0
    %179 = vmatprep.subr.mxu0 0.0
    %180 = vmatpush2.msra.mxu0 0.0
    %181 = vmatprep.subr.mxu0 0.0
    %182 = vmatpush2.msra.mxu0 0.0
    %183 = vmatprep.subr.mxu0 0.0
    %184 = vmatpush2.msra.mxu0 0.0
    %185 = vmatprep.subr.mxu0 0.0
    %186 = vmatpush2.msra.mxu0 0.0
    %187 = vmatprep.subr.mxu0 0.0
    %188 = vmatpush2.msra.mxu0 0.0
    %189 = vmatprep.subr.mxu0 0.0
    %190 = vmatpush2.msra.mxu0 0.0
    %191 = vmatprep.subr.mxu0 0.0
    %192 = vmatpush2.msra.mxu0 0.0
    %193 = vmatprep.subr.mxu0 0.0
    %194 = vmatpush2.msra.mxu0 0.0
    %195 = vmatprep.subr.mxu0 0.0
    %196 = vmatpush2.msra.mxu0 0.0
    %197 = vmatprep.subr.mxu0 0.0
    %198 = vmatpush2.msra.mxu0 0.0
    %199 = vmatprep.mubr.f32.mxu0 0.0
    %200 = vmatmul.mubr.f32.gmra.mxu0 %v124
    %v201 = vpop.f32.mrf.mxu0
    %v202 = vadd.f32 0.0, %v201
    %v203 = vpop.f32.mrf.mxu0
    %204 = vmatprep.mubr.f32.mxu0 0.0
    %205 = vmatmul.mubr.f32.gmra.mxu0 %v127
    %v206 = vpop.f32.mrf.mxu0
    %v207 = vadd.f32 0.0, %v206
    %v208 = vpop.f32.mrf.mxu0
    %209 = vmatprep.mubr.f32.mxu0 0.0
    %210 = vmatmul.mubr.f32.gmra.mxu0 %v130
    %v211 = vpop.f32.mrf.mxu0
    %v212 = vadd.f32 0.0, %v211
    %v213 = vpop.f32.mrf.mxu0
    %214 = vmatprep.mubr.f32.mxu0 0.0
    %215 = vmatmul.mubr.f32.gmra.mxu0 %v133
    %v216 = vpop.f32.mrf.mxu0
    %v217 = vadd.f32 0.0, %v216
    %v218 = vpop.f32.mrf.mxu0
    %219 = vdwg.mxu0
    %v220 = vld [vmem:[#allocation7] sm:$0xff]
    %v221 = vld [vmem:[#allocation7 + $0x8] sm:$0xff]
    %v222 = vld [vmem:[#allocation7 + $0x10] sm:$0xff]
    %v223 = vld [vmem:[#allocation7 + $0x18] sm:$0xff]
    %vm224 = vcmask 392192
    %v226 = vsel %vm224, %v220, 0
    %v229 = vsel %vm224, %v221, 0
    %v232 = vsel %vm224, %v222, 0
    %v235 = vsel %vm224, %v223, 0
    %237 = vmatprep.subr.mxu0 0.0
    %238 = vmatpush1.msra.mxu0 0.0
    %239 = vmatprep.subr.mxu0 0.0
    %240 = vmatpush1.msra.mxu0 0.0
    %241 = vmatprep.subr.mxu0 0.0
    %242 = vmatpush1.msra.mxu0 0.0
    %243 = vmatprep.subr.mxu0 0.0
    %244 = vmatpush1.msra.mxu0 0.0
    %245 = vmatprep.subr.mxu0 0.0
    %246 = vmatpush1.msra.mxu0 0.0
    %247 = vmatprep.subr.mxu0 0.0
    %248 = vmatpush1.msra.mxu0 0.0
    %249 = vmatprep.subr.mxu0 0.0
    %250 = vmatpush1.msra.mxu0 0.0
    %251 = vmatprep.subr.mxu0 0.0
    %252 = vmatpush1.msra.mxu0 0.0
    %253 = vmatprep.subr.mxu0 0.0
    %254 = vmatpush1.msra.mxu0 0.0
    %255 = vmatprep.subr.mxu0 0.0
    %256 = vmatpush1.msra.mxu0 0.0
    %257 = vmatprep.subr.mxu0 0.0
    %258 = vmatpush1.msra.mxu0 %v117
    %259 = vmatprep.subr.mxu0 0.0
    %260 = vmatpush1.msra.mxu0 %v116
    %261 = vmatprep.subr.mxu0 0.0
    %262 = vmatpush1.msra.mxu0 %v115
    %263 = vmatprep.subr.mxu0 0.0
    %264 = vmatpush1.msra.mxu0 %v114
    %265 = vmatprep.subr.mxu0 0.0
    %266 = vmatpush1.msra.mxu0 %v113
    %267 = vmatprep.subr.mxu0 0.0
    %268 = vmatpush1.msra.mxu0 %v112
    %269 = vmatprep.subr.mxu0 0.0
    %270 = vmatpush2.msra.mxu0 0.0
    %271 = vmatprep.subr.mxu0 0.0
    %272 = vmatpush2.msra.mxu0 0.0
    %273 = vmatprep.subr.mxu0 0.0
    %274 = vmatpush2.msra.mxu0 0.0
    %275 = vmatprep.subr.mxu0 0.0
    %276 = vmatpush2.msra.mxu0 0.0
    %277 = vmatprep.subr.mxu0 0.0
    %278 = vmatpush2.msra.mxu0 0.0
    %279 = vmatprep.subr.mxu0 0.0
    %280 = vmatpush2.msra.mxu0 0.0
    %281 = vmatprep.subr.mxu0 0.0
    %282 = vmatpush2.msra.mxu0 0.0
    %283 = vmatprep.subr.mxu0 0.0
    %284 = vmatpush2.msra.mxu0 0.0
    %285 = vmatprep.subr.mxu0 0.0
    %286 = vmatpush2.msra.mxu0 0.0
    %287 = vmatprep.subr.mxu0 0.0
    %288 = vmatpush2.msra.mxu0 0.0
    %289 = vmatprep.subr.mxu0 0.0
    %290 = vmatpush2.msra.mxu0 0.0
    %291 = vmatprep.subr.mxu0 0.0
    %292 = vmatpush2.msra.mxu0 0.0
    %293 = vmatprep.subr.mxu0 0.0
    %294 = vmatpush2.msra.mxu0 0.0
    %295 = vmatprep.subr.mxu0 0.0
    %296 = vmatpush2.msra.mxu0 0.0
    %297 = vmatprep.subr.mxu0 0.0
    %298 = vmatpush2.msra.mxu0 0.0
    %299 = vmatprep.subr.mxu0 0.0
    %300 = vmatpush2.msra.mxu0 0.0
    %301 = vmatprep.mubr.f32.mxu0 0.0
    %302 = vmatmul.mubr.f32.gmra.mxu0 %v226
    %v303 = vpop.f32.mrf.mxu0
    %v304 = vadd.f32 0.0, %v303
    %v305 = vpop.f32.mrf.mxu0
    %306 = vmatprep.mubr.f32.mxu0 0.0
    %307 = vmatmul.mubr.f32.gmra.mxu0 %v229
    %v308 = vpop.f32.mrf.mxu0
    %v309 = vadd.f32 0.0, %v308
    %v310 = vpop.f32.mrf.mxu0
    %311 = vmatprep.mubr.f32.mxu0 0.0
    %312 = vmatmul.mubr.f32.gmra.mxu0 %v232
    %v313 = vpop.f32.mrf.mxu0
    %v314 = vadd.f32 0.0, %v313
    %v315 = vpop.f32.mrf.mxu0
    %316 = vmatprep.mubr.f32.mxu0 0.0
    %317 = vmatmul.mubr.f32.gmra.mxu0 %v235
    %v318 = vpop.f32.mrf.mxu0
    %v319 = vadd.f32 0.0, %v318
    %v320 = vpop.f32.mrf.mxu0
    %321 = vdwg.mxu0
    %v322 = vmul.f32 %v202, %v304
    %v323 = vmul.f32 %v207, %v309
    %v324 = vmul.f32 %v212, %v314
    %v325 = vmul.f32 %v217, %v319
    %v326 = vadd.f32 %v322, %v323
    %v327 = vadd.f32 %v326, %v324
    %v328 = vadd.f32 %v327, %v325
    %v329 = vrot.slane %v328, 4
    %v330 = vadd.f32 %v328, %v329
    %v331 = vrot.slane %v330, 2
    %v332 = vadd.f32 %v330, %v331
    %v333 = vrot.slane %v332, 1
    %v334 = vadd.f32 %v332, %v333
    %335 = vst [vmem:[#allocation8] sm:$0x1] %v334
    // Predicated region
    $region30: #{tpu_custom_call.1} parent=1 // pred_check
      _
    $region31: #{tpu_custom_call.1} parent=1 // pred_check_branch
      %337 = sbr.rel (0) target = $region33
    $region32: #{tpu_custom_call.1} parent=1 // pred_region
      %s339 = ssub.s32 16, 16
      %340 = vsyncadd [#allocation4], %s339
      %s342 = sshll.u32 [#allocation8], 4
      %s343 = int_to_ptr.vmem [resolvable:$true] %s342
      %345 = dma.vmem_to_hbm [thread:$0]  %s343, 16, %s4, [#allocation4]
    $region33: #{tpu_custom_call.1} parent=1 // pred_fallthru
      _
    // Predicated region
    $region34: #{tpu_custom_call.1} parent=1 // pred_check
      _
    $region35: #{tpu_custom_call.1} parent=1 // pred_check_branch
      %347 = sbr.rel (0) target = $region37
    $region36: #{tpu_custom_call.1} parent=1 // pred_region
      %348 = dma.done [#allocation4], 16
    $region37: #{tpu_custom_call.1} parent=1 // pred_fallthru
      _
    %349 = vsyncpa [#allocation3], 1
    %350 = vsyncpa [#allocation6], 1
    %351 = vsyncpa [#allocation4], 1

</llo_original>
